<compile_context>
chip_gen: v7x
topology: tpu7x:2x2x1
jax: 0.10.0
libtpu: 0.0.40
codegen_flags: <defaults>
</compile_context>

<pallas_src>
import functools

import jax
import jax.numpy as jnp
from jax.experimental import pallas as pl
from jax.experimental.pallas import tpu as pltpu

_LANES = 128


def _round_up(x: int, m: int) -> int:
    return ((x + m - 1) // m) * m


def _bpr_loss_kernel(pos_ref, neg_ref, out_ref, *, tile_rows, lanes, last_valid):
    # Cast to f32 on-chip (inputs may arrive as bf16 etc.).
    d = pos_ref[...].astype(jnp.float32) - neg_ref[...].astype(jnp.float32)

    # Stable log-sigmoid:  log(sigmoid(d)) = min(d, 0) - log1p(exp(-|d|))
    log_sig = jnp.minimum(d, 0.0) - jnp.log1p(jnp.exp(-jnp.abs(d)))

    def fold(x):
        # Sublane-folded partial sum: (tile_rows,128) -> (tile_rows//8,8,128) -> (8,128).
        # Pure cross-vreg VPU adds; the final cross-lane reduce happens once
        # in the wrapper.
        return jnp.sum(x.reshape(tile_rows // 8, 8, lanes), axis=0)

    if last_valid == tile_rows * lanes:
        # Every block (including the last one) is fully valid: no mask at all.
        out_ref[...] = fold(log_sig)
    else:
        is_last = pl.program_id(0) == pl.num_programs(0) - 1

        @pl.when(jnp.logical_not(is_last))
        def _():
            # Interior blocks are always fully valid: plain unmasked sum.
            out_ref[...] = fold(log_sig)

        @pl.when(is_last)
        def _():
            # Final block: mask out lane-pad zeros and rows past the array end
            # (those rows hold undefined VMEM data in a partial block).
            # Block-local index bound => small values, no int32 overflow.
            row = jax.lax.broadcasted_iota(jnp.int32, d.shape, 0)
            col = jax.lax.broadcasted_iota(jnp.int32, d.shape, 1)
            valid = (row * lanes + col) < last_valid
            out_ref[...] = fold(jnp.where(valid, log_sig, 0.0))


def bpr_loss(pos: jax.Array, neg: jax.Array, *, block_bytes: int = 4 << 20) -> jax.Array:
    """Computes -mean(log(sigmoid(pos - neg))) with a Pallas TPU kernel."""
    assert pos.shape == neg.shape, "pos and neg must have the same shape"

    dt = jnp.promote_types(pos.dtype, neg.dtype)
    if dt == jnp.float64:  # TPU: keep everything <= 32-bit
        dt = jnp.float32
    pos_flat = pos.reshape(-1).astype(dt)
    neg_flat = neg.reshape(-1).astype(dt)
    total = pos_flat.size

    # Sublane granularity for the packed dtype: f32 -> 8, bf16 -> 16, int8/fp8 -> 32.
    itemsize = jnp.dtype(dt).itemsize
    sub = max(8, 32 // max(itemsize, 1))

    # Lane-dense (rows, 128) view.  Pad only when total is not a multiple of
    # 128 (pad < 128 elements); the common aligned case is a free reshape.
    rows = pl.cdiv(total, _LANES)
    lane_pad = rows * _LANES - total
    if lane_pad:
        pos_flat = jnp.pad(pos_flat, (0, lane_pad))
        neg_flat = jnp.pad(neg_flat, (0, lane_pad))
    pos2d = pos_flat.reshape(rows, _LANES)
    neg2d = neg_flat.reshape(rows, _LANES)

    # Tile sizing: ~block_bytes per input per grid step (8192 rows f32,
    # 16384 rows bf16), sublane-aligned and clamped to the array.  Pallas
    # handles the partial last block; the in-kernel mask covers it.
    tr = max(sub, (block_bytes // (_LANES * itemsize)) // sub * sub)
    tr = min(tr, _round_up(rows, sub))
    num_blocks = pl.cdiv(rows, tr)
    last_valid = total - (num_blocks - 1) * tr * _LANES  # valid elems in last block

    kernel = functools.partial(
        _bpr_loss_kernel, tile_rows=tr, lanes=_LANES, last_valid=last_valid
    )

    partials = pl.pallas_call(
        kernel,
        out_shape=jax.ShapeDtypeStruct((num_blocks * 8, _LANES), jnp.float32),
        grid_spec=pltpu.PrefetchScalarGridSpec(
            num_scalar_prefetch=0,
            grid=(num_blocks,),
            in_specs=[
                pl.BlockSpec((tr, _LANES), lambda i: (i, 0)),
                pl.BlockSpec((tr, _LANES), lambda i: (i, 0)),
            ],
            out_specs=pl.BlockSpec((8, _LANES), lambda i: (i, 0)),
        ),
        compiler_params=pltpu.CompilerParams(
            # Parallel grid => blocks shard across both TCs on v7x.
            dimension_semantics=("parallel",),
            # 2 inputs x 2 pipeline buffers x ~4 MiB = ~16 MiB; raise the limit
            # explicitly so v5e's 16 MiB default scoped VMEM doesn't OOM, while
            # staying well under v7x's 64 MiB physical VMEM.
            vmem_limit_bytes=48 << 20,
        ),
    )(pos2d, neg2d)

    # Final (tiny) reduction + mean in the wrapper.
    return -jnp.sum(partials, dtype=jnp.float32) / jnp.float32(total)


if __name__ == "__main__":
    key = jax.random.PRNGKey(0)
    kp, kn = jax.random.split(key)

    # Small shapes; last dim deliberately not a multiple of 128 so the
    # flatten / partial-last-block / mask path is exercised (32*200 = 6400,
    # which IS a multiple of 128, so the no-pad reshape path is also hit).
    B, D = 32, 200
    pos = jax.random.normal(kp, (B, D), dtype=jnp.float32)
    neg = jax.random.normal(kn, (B, D), dtype=jnp.float32)

    loss_fn = jax.jit(bpr_loss)

    loss = loss_fn(pos, neg)
    jax.block_until_ready(loss)

    ref = -jnp.mean(jax.nn.log_sigmoid(pos - neg))
    assert jnp.allclose(loss, ref, rtol=1e-5, atol=1e-6), (loss, ref)

    # Non-multiple-of-128 total exercises the tiny lane pad + last-block mask.
    pos_odd = pos.reshape(-1)[:6397]
    neg_odd = neg.reshape(-1)[:6397]
    loss_odd = loss_fn(pos_odd, neg_odd)
    jax.block_until_ready(loss_odd)
    ref_odd = -jnp.mean(jax.nn.log_sigmoid(pos_odd - neg_odd))
    assert jnp.allclose(loss_odd, ref_odd, rtol=1e-5, atol=1e-6), (loss_odd, ref_odd)

    # Native bf16 inputs go straight into the kernel (f32 math on-chip).
    pos_bf = pos.astype(jnp.bfloat16)
    neg_bf = neg.astype(jnp.bfloat16)
    loss_bf = loss_fn(pos_bf, neg_bf)
    jax.block_until_ready(loss_bf)
    ref_bf = -jnp.mean(
        jax.nn.log_sigmoid(pos_bf.astype(jnp.float32) - neg_bf.astype(jnp.float32))
    )
    assert jnp.allclose(loss_bf, ref_bf, rtol=2e-2, atol=2e-2), (loss_bf, ref_bf)

    print("KERNEL_OK")
</pallas_src>

<mosaic_0001>
module attributes {stable_mosaic.version = 11 : i64} {
  func.func @_bpr_loss_kernel(%arg0: i32, %arg1: memref<56x128xf32, #tpu.memory_space<vmem>>, %arg2: memref<56x128xf32, #tpu.memory_space<vmem>>, %arg3: memref<8x128xf32, #tpu.memory_space<vmem>>) attributes {dimension_semantics = [#tpu.dimension_semantics<parallel>], iteration_bounds = array<i64: 1>, scalar_prefetch = 0 : i64, scratch_operands = 0 : i64, tpu.core_type = #tpu.core_type<tc>, window_params = [{transform_indices = @transform_0, window_bounds = array<i64: 56, 128>}, {transform_indices = @transform_1, window_bounds = array<i64: 56, 128>}, {transform_indices = @transform_2, window_bounds = array<i64: 8, 128>}]} {
    %c0 = arith.constant 0 : index
    %c0_0 = arith.constant 0 : index
    %0 = vector.load %arg1[%c0, %c0_0] : memref<56x128xf32, #tpu.memory_space<vmem>>, vector<56x128xf32>
    %c0_1 = arith.constant 0 : index
    %c0_2 = arith.constant 0 : index
    %1 = vector.load %arg2[%c0_1, %c0_2] : memref<56x128xf32, #tpu.memory_space<vmem>>, vector<56x128xf32>
    %2 = arith.subf %0, %1 : vector<56x128xf32>
    %cst = arith.constant 0.000000e+00 : f32
    %3 = vector.broadcast %cst : f32 to vector<56x128xf32>
    %4 = arith.minimumf %2, %3 : vector<56x128xf32>
    %5 = math.absf %2 : vector<56x128xf32>
    %cst_3 = arith.constant 0.000000e+00 : f32
    %6 = vector.broadcast %cst_3 : f32 to vector<56x128xf32>
    %7 = arith.subf %6, %5 : vector<56x128xf32>
    %8 = math.exp %7 : vector<56x128xf32>
    %9 = math.log1p %8 : vector<56x128xf32>
    %10 = arith.subf %4, %9 : vector<56x128xf32>
    %c0_i32 = arith.constant 0 : i32
    %11 = arith.cmpi eq, %arg0, %c0_i32 : i32
    %true = arith.constant true
    %12 = arith.xori %11, %true : i1
    %13 = arith.extui %12 : i1 to i32
    %c0_i32_4 = arith.constant 0 : i32
    %14 = arith.cmpi ne, %13, %c0_i32_4 : i32
    scf.if %14 {
      %17 = vector.shape_cast %10 : vector<56x128xf32> to vector<7x8x128xf32>
      %cst_6 = arith.constant dense<0.000000e+00> : vector<8x128xf32>
      %18 = vector.multi_reduction <add>, %17, %cst_6 [0] : vector<7x8x128xf32> to vector<8x128xf32>
      %c0_7 = arith.constant 0 : index
      %c0_8 = arith.constant 0 : index
      %19 = vector.load %arg3[%c0_7, %c0_8] : memref<8x128xf32, #tpu.memory_space<vmem>>, vector<8x128xf32>
      tpu.vector_store %arg3[%c0_7, %c0_8], %18 {strides = array<i32>} : memref<8x128xf32, #tpu.memory_space<vmem>>, vector<8x128xf32>,
    } else {
    }
    %15 = arith.extui %11 : i1 to i32
    %c0_i32_5 = arith.constant 0 : i32
    %16 = arith.cmpi ne, %15, %c0_i32_5 : i32
    scf.if %16 {
      %17 = tpu.iota {dimensions = array<i32: 0>} : vector<56x128xi32>
      %18 = tpu.iota {dimensions = array<i32: 1>} : vector<56x128xi32>
      %c128_i32 = arith.constant 128 : i32
      %19 = vector.broadcast %c128_i32 : i32 to vector<56x128xi32>
      %20 = arith.muli %17, %19 : vector<56x128xi32>
      %21 = arith.addi %20, %18 : vector<56x128xi32>
      %c6400_i32 = arith.constant 6400 : i32
      %22 = vector.broadcast %c6400_i32 : i32 to vector<56x128xi32>
      %23 = arith.cmpi slt, %21, %22 : vector<56x128xi32>
      %cst_6 = arith.constant 0.000000e+00 : f32
      %24 = vector.broadcast %cst_6 : f32 to vector<56x128xf32>
      %25 = arith.select %23, %10, %24 : vector<56x128xi1>, vector<56x128xf32>
      %26 = vector.shape_cast %25 : vector<56x128xf32> to vector<7x8x128xf32>
      %cst_7 = arith.constant dense<0.000000e+00> : vector<8x128xf32>
      %27 = vector.multi_reduction <add>, %26, %cst_7 [0] : vector<7x8x128xf32> to vector<8x128xf32>
      %c0_8 = arith.constant 0 : index
      %c0_9 = arith.constant 0 : index
      %28 = vector.load %arg3[%c0_8, %c0_9] : memref<8x128xf32, #tpu.memory_space<vmem>>, vector<8x128xf32>
      tpu.vector_store %arg3[%c0_8, %c0_9], %27 {strides = array<i32>} : memref<8x128xf32, #tpu.memory_space<vmem>>, vector<8x128xf32>,
    } else {
    }
    return
  }
  func.func @transform_0(%arg0: i32) -> (i32, i32) {
    %c0_i32 = arith.constant 0 : i32
    %c0_i32_0 = arith.constant 0 : i32
    return %arg0, %c0_i32 : i32, i32
  }
  func.func @transform_1(%arg0: i32) -> (i32, i32) {
    %c0_i32 = arith.constant 0 : i32
    %c0_i32_0 = arith.constant 0 : i32
    return %arg0, %c0_i32 : i32, i32
  }
  func.func @transform_2(%arg0: i32) -> (i32, i32) {
    %c0_i32 = arith.constant 0 : i32
    %c0_i32_0 = arith.constant 0 : i32
    return %arg0, %c0_i32 : i32, i32
  }
}

</mosaic_0001>

<llo_original>
// kernel: bpr_loss.1
$region0: #{bpr_loss.1}
  #allocation0 [shape = 'u32[]', space=smem, size = 0x4, offset = 0x4, fixed_abs, tag = 'smem constant byte address 0x4 - core index']
  #allocation1 [shape = 'u32[144,128]{1,0:T(1,128)}', space=vmem, size = 0x12000, scoped, tag = 'internal scratch']
  %s0 = inlined_call_operand.vmem [shape: f32[50,128], index: 0, kind: input, shape index: {}]
  %s1 = inlined_call_operand.vmem [shape: f32[50,128], index: 1, kind: input, shape index: {}]
  %s2 = inlined_call_operand.vmem [shape: f32[8,128], index: 2, kind: output, shape index: {}]
  %s3 = sld [smem:[#allocation0]]
  $region26: #{bpr_loss.1} parent=0
    _
  %s5 = ssub.s32 1, %s3
  %s6 = scalar_select 0, %s5, %s3
  // Predicated region
  $region2: #{bpr_loss.1} parent=0 // pred_check
    _
  $region3: #{bpr_loss.1} parent=0 // pred_check_branch
    %8 = sbr.rel (0) target = $region5
  $region4: #{bpr_loss.1} parent=0 // pred_region
    _
  $region5: #{bpr_loss.1} parent=0 // pred_fallthru
    _
  // Predicated region
  $region6: #{bpr_loss.1} parent=0 // pred_check
    _
  $region7: #{bpr_loss.1} parent=0 // pred_check_branch
    %10 = sbr.rel (0) target = $region9
  $region8: #{bpr_loss.1} parent=0 // pred_region
    _
  $region9: #{bpr_loss.1} parent=0 // pred_fallthru
    _
  %v11 = vld [vmem:[%s0] sm:$0xff]
  %v12 = vld [vmem:[%s0 + $0x8] sm:$0xff]
  %v13 = vld [vmem:[%s0 + $0x10] sm:$0xff]
  %v14 = vld [vmem:[%s0 + $0x18] sm:$0xff]
  %v15 = vld [vmem:[%s0 + $0x20] sm:$0xff]
  %v16 = vld [vmem:[%s0 + $0x28] sm:$0xff]
  %v17 = vld [vmem:[%s0 + $0x30] sm:$0xff]
  %v18 = vld [vmem:[%s1] sm:$0xff]
  %v19 = vld [vmem:[%s1 + $0x8] sm:$0xff]
  %v20 = vld [vmem:[%s1 + $0x10] sm:$0xff]
  %v21 = vld [vmem:[%s1 + $0x18] sm:$0xff]
  %v22 = vld [vmem:[%s1 + $0x20] sm:$0xff]
  %v23 = vld [vmem:[%s1 + $0x28] sm:$0xff]
  %v24 = vld [vmem:[%s1 + $0x30] sm:$0xff]
  %v25 = vsub.f32 %v11, %v18
  %v26 = vsub.f32 %v12, %v19
  %v27 = vsub.f32 %v13, %v20
  %v28 = vsub.f32 %v14, %v21
  %v29 = vsub.f32 %v15, %v22
  %v30 = vsub.f32 %v16, %v23
  %v31 = vsub.f32 %v17, %v24
  %v32 = vmin.f32 %v25, 0.0
  %v33 = vmin.f32 %v26, 0.0
  %v34 = vmin.f32 %v27, 0.0
  %v35 = vmin.f32 %v28, 0.0
  %v36 = vmin.f32 %v29, 0.0
  %v37 = vmin.f32 %v30, 0.0
  %v38 = vmin.f32 %v31, 0.0
  %v39 = vand.u32 2147483647, %v25
  %v40 = vand.u32 2147483647, %v26
  %v41 = vand.u32 2147483647, %v27
  %v42 = vand.u32 2147483647, %v28
  %v43 = vand.u32 2147483647, %v29
  %v44 = vand.u32 2147483647, %v30
  %v45 = vand.u32 2147483647, %v31
  %v46 = vsub.f32 0.0, %v39
  %v47 = vsub.f32 0.0, %v40
  %v48 = vsub.f32 0.0, %v41
  %v49 = vsub.f32 0.0, %v42
  %v50 = vsub.f32 0.0, %v43
  %v51 = vsub.f32 0.0, %v44
  %v52 = vsub.f32 0.0, %v45
  %v53 = vmul.f32 %v46, 1.442695
  %v54 = vpow.pop %v53
  %v55 = vmul.f32 %v47, 1.442695
  %v56 = vpow.pop %v55
  %v57 = vmul.f32 %v48, 1.442695
  %v58 = vpow.pop %v57
  %v59 = vmul.f32 %v49, 1.442695
  %v60 = vpow.pop %v59
  %v61 = vmul.f32 %v50, 1.442695
  %v62 = vpow.pop %v61
  %v63 = vmul.f32 %v51, 1.442695
  %v64 = vpow.pop %v63
  %v65 = vmul.f32 %v52, 1.442695
  %v66 = vpow.pop %v65
  %v67 = vadd.f32 %v54, 1.0
  %v68 = vlog2.pop %v67
  %v69 = vmul.f32 %v68, 0.6931472
  %v70 = vmul.f32 -0.5, %v54
  %v71 = vadd.f32 %v70, 1.0
  %v72 = vmul.f32 %v71, %v54
  %v73 = vand.u32 2147483647, %v54
  %vm74 = vcmp.lt.f32.partialorder %v73, 0.0004427343
  %v75 = vsel %vm74, %v72, %v69
  %v76 = vadd.f32 %v56, 1.0
  %v77 = vlog2.pop %v76
  %v78 = vmul.f32 %v77, 0.6931472
  %v79 = vmul.f32 -0.5, %v56
  %v80 = vadd.f32 %v79, 1.0
  %v81 = vmul.f32 %v80, %v56
  %v82 = vand.u32 2147483647, %v56
  %vm83 = vcmp.lt.f32.partialorder %v82, 0.0004427343
  %v84 = vsel %vm83, %v81, %v78
  %v85 = vadd.f32 %v58, 1.0
  %v86 = vlog2.pop %v85
  %v87 = vmul.f32 %v86, 0.6931472
  %v88 = vmul.f32 -0.5, %v58
  %v89 = vadd.f32 %v88, 1.0
  %v90 = vmul.f32 %v89, %v58
  %v91 = vand.u32 2147483647, %v58
  %vm92 = vcmp.lt.f32.partialorder %v91, 0.0004427343
  %v93 = vsel %vm92, %v90, %v87
  %v94 = vadd.f32 %v60, 1.0
  %v95 = vlog2.pop %v94
  %v96 = vmul.f32 %v95, 0.6931472
  %v97 = vmul.f32 -0.5, %v60
  %v98 = vadd.f32 %v97, 1.0
  %v99 = vmul.f32 %v98, %v60
  %v100 = vand.u32 2147483647, %v60
  %vm101 = vcmp.lt.f32.partialorder %v100, 0.0004427343
  %v102 = vsel %vm101, %v99, %v96
  %v103 = vadd.f32 %v62, 1.0
  %v104 = vlog2.pop %v103
  %v105 = vmul.f32 %v104, 0.6931472
  %v106 = vmul.f32 -0.5, %v62
  %v107 = vadd.f32 %v106, 1.0
  %v108 = vmul.f32 %v107, %v62
  %v109 = vand.u32 2147483647, %v62
  %vm110 = vcmp.lt.f32.partialorder %v109, 0.0004427343
  %v111 = vsel %vm110, %v108, %v105
  %v112 = vadd.f32 %v64, 1.0
  %v113 = vlog2.pop %v112
  %v114 = vmul.f32 %v113, 0.6931472
  %v115 = vmul.f32 -0.5, %v64
  %v116 = vadd.f32 %v115, 1.0
  %v117 = vmul.f32 %v116, %v64
  %v118 = vand.u32 2147483647, %v64
  %vm119 = vcmp.lt.f32.partialorder %v118, 0.0004427343
  %v120 = vsel %vm119, %v117, %v114
  %v121 = vadd.f32 %v66, 1.0
  %v122 = vlog2.pop %v121
  %v123 = vmul.f32 %v122, 0.6931472
  %v124 = vmul.f32 -0.5, %v66
  %v125 = vadd.f32 %v124, 1.0
  %v126 = vmul.f32 %v125, %v66
  %v127 = vand.u32 2147483647, %v66
  %vm128 = vcmp.lt.f32.partialorder %v127, 0.0004427343
  %v129 = vsel %vm128, %v126, %v123
  %v130 = vsub.f32 %v32, %v75
  %v131 = vsub.f32 %v33, %v84
  %v132 = vsub.f32 %v34, %v93
  %v133 = vsub.f32 %v35, %v102
  %v134 = vsub.f32 %v36, %v111
  %v135 = vsub.f32 %v37, %v120
  %v136 = vsub.f32 %v38, %v129
  %p137 = scmp.eq.s32.totalorder 0, 0
  %p138 = scmp.ne.s32.totalorder 0, 0
  // Predicated region
  $region10: #{bpr_loss.1} parent=0 // pred_check
    %p139 = pneg %p138
  $region11: #{bpr_loss.1} parent=0 // pred_check_branch
    %141 = sbr.rel (%p139) target = $region13
  $region12: #{bpr_loss.1} parent=0 // pred_region
    %v142 = vadd.f32 %v130, %v131
    %v143 = vadd.f32 %v142, %v132
    %v144 = vadd.f32 %v143, %v133
    %v145 = vadd.f32 %v144, %v134
    %v146 = vadd.f32 %v145, %v135
    %v147 = vadd.f32 %v146, %v136
    %148 = vst [vmem:[%s2] sm:$0xff] %v147
  $region13: #{bpr_loss.1} parent=0 // pred_fallthru
    _
  // Predicated region
  $region14: #{bpr_loss.1} parent=0 // pred_check
    %p149 = pneg %p137
  $region15: #{bpr_loss.1} parent=0 // pred_check_branch
    %151 = sbr.rel (%p149) target = $region17
  $region16: #{bpr_loss.1} parent=0 // pred_region
    %v152 = vlaneseq
    %v153 = vshrl.u32 %v152, 7
    %v154 = vadd.s32 %v153, 8
    %v155 = vadd.s32 %v153, 16
    %v156 = vadd.s32 %v153, 24
    %v157 = vadd.s32 %v153, 32
    %v158 = vadd.s32 %v153, 40
    %v159 = vadd.s32 %v153, 48
    %v160 = vlaneseq
    %v161 = vand.u32 %v160, 127
    %v162 = vmul.u32 %v153, 128
    %v163 = vmul.u32 %v154, 128
    %v164 = vmul.u32 %v155, 128
    %v165 = vmul.u32 %v156, 128
    %v166 = vmul.u32 %v157, 128
    %v167 = vmul.u32 %v158, 128
    %v168 = vmul.u32 %v159, 128
    %v169 = vadd.s32 %v162, %v161
    %v170 = vadd.s32 %v163, %v161
    %v171 = vadd.s32 %v164, %v161
    %v172 = vadd.s32 %v165, %v161
    %v173 = vadd.s32 %v166, %v161
    %v174 = vadd.s32 %v167, %v161
    %v175 = vadd.s32 %v168, %v161
    %vm176 = vcmp.lt.s32.totalorder %v169, 6400
    %vm177 = vcmp.lt.s32.totalorder %v170, 6400
    %vm178 = vcmp.lt.s32.totalorder %v171, 6400
    %vm179 = vcmp.lt.s32.totalorder %v172, 6400
    %vm180 = vcmp.lt.s32.totalorder %v173, 6400
    %vm181 = vcmp.lt.s32.totalorder %v174, 6400
    %vm182 = vcmp.lt.s32.totalorder %v175, 6400
    %v183 = vsel %vm176, %v130, 0.0
    %v184 = vsel %vm177, %v131, 0.0
    %v185 = vsel %vm178, %v132, 0.0
    %v186 = vsel %vm179, %v133, 0.0
    %v187 = vsel %vm180, %v134, 0.0
    %v188 = vsel %vm181, %v135, 0.0
    %v189 = vsel %vm182, %v136, 0.0
    %v190 = vadd.f32 %v183, %v184
    %v191 = vadd.f32 %v190, %v185
    %v192 = vadd.f32 %v191, %v186
    %v193 = vadd.f32 %v192, %v187
    %v194 = vadd.f32 %v193, %v188
    %v195 = vadd.f32 %v194, %v189
    %196 = vst [vmem:[%s2] sm:$0xff] %v195
  $region17: #{bpr_loss.1} parent=0 // pred_fallthru
    _
  // Predicated region
  $region18: #{bpr_loss.1} parent=0 // pred_check
    _
  $region19: #{bpr_loss.1} parent=0 // pred_check_branch
    %198 = sbr.rel (0) target = $region21
  $region20: #{bpr_loss.1} parent=0 // pred_region
    _
  $region21: #{bpr_loss.1} parent=0 // pred_fallthru
    _
  // Predicated region
  $region22: #{bpr_loss.1} parent=0 // pred_check
    _
  $region23: #{bpr_loss.1} parent=0 // pred_check_branch
    %200 = sbr.rel (0) target = $region25
  $region24: #{bpr_loss.1} parent=0 // pred_region
    _
  $region25: #{bpr_loss.1} parent=0 // pred_fallthru
    _

</llo_original>
